<compile_context>
chip_gen: v7x
topology: tpu7x:2x2x1
jax: 0.10.0
libtpu: 0.0.40
codegen_flags: <defaults>
</compile_context>

<pallas_src>
import functools

import jax
import jax.numpy as jnp
from jax.experimental import pallas as pl
from jax.experimental.pallas import tpu as pltpu

H = 32                 # hidden width per branch  (layers = [2, H, H])
NB = 3                 # number of branches in the original module
H3 = NB * H            # fused hidden width (96)

# Module-level globals of the original code (singularity centres A and B).
A_POINT = (-1.0, 0.0)
B_POINT = (1.0, 0.0)

# Column layout of the packed (H3, 128) parameter slab.
_COL_W1C0 = 96         # first-layer weight column 0
_COL_W1C1 = 97         # first-layer weight column 1
_COL_B1 = 98           # first-layer bias
_COL_B2 = 99           # second-layer bias
_COL_B3 = 100          # head biases (rows 0..2 meaningful)


def _round_up(a, m):
    return (a + m - 1) // m * m


def _singularity_kernel(x_ref, p_ref, w3_ref, o_ref, *, use_bf16):
    """One batch tile: x_ref (2, TB) -> o_ref (1, TB), batch on the lane axis."""
    mm_t = jnp.bfloat16 if use_bf16 else jnp.float32

    x0 = x_ref[0:1, :]                                   # (1, TB)
    x1 = x_ref[1:2, :]                                   # (1, TB)

    w2 = p_ref[:, 0:H3]                                  # (H3, H3) block-diag
    w1c0 = p_ref[:, _COL_W1C0:_COL_W1C0 + 1]             # (H3, 1)
    w1c1 = p_ref[:, _COL_W1C1:_COL_W1C1 + 1]             # (H3, 1)
    b1 = p_ref[:, _COL_B1:_COL_B1 + 1]                   # (H3, 1)
    b2 = p_ref[:, _COL_B2:_COL_B2 + 1]                   # (H3, 1)
    b3 = p_ref[0:8, _COL_B3:_COL_B3 + 1]                 # (8, 1), rows 0..2 used

    # Layer 1: K=2 contraction done as two VPU broadcast-FMAs (no MXU push).
    h1 = jnp.maximum(w1c0 * x0 + w1c1 * x1 + b1, 0.0)                  # (H3, TB)

    # Layer 2: the three branches fused into one block-diagonal MXU matmul.
    h2 = jnp.dot(w2.astype(mm_t), h1.astype(mm_t),
                 preferred_element_type=jnp.float32) + b2              # (H3, TB)

    # Branch-dependent activation via static sublane slices (2H = 64 aligned):
    # branches 0/1 (rows [0, 2H)) -> ReLU; branch 2 (rows [2H, 3H)) -> tanh.
    relu_part = jnp.maximum(h2[0:2 * H, :], 0.0)                       # (2H, TB)
    tanh_part = jnp.tanh(h2[2 * H:H3, :])                              # (H,  TB)

    # Layer 3: fused scalar heads; rows 0..2 of p are the per-branch outputs.
    p = (jnp.dot(w3_ref[:, 0:2 * H].astype(mm_t), relu_part.astype(mm_t),
                 preferred_element_type=jnp.float32)
         + jnp.dot(w3_ref[:, 2 * H:H3].astype(mm_t), tanh_part.astype(mm_t),
                   preferred_element_type=jnp.float32)
         + b3)                                                         # (8, TB)

    # singularity(x, c) = 0.01 * log((x0 - cx)^2 + (x1 - cy)^2)
    sing_a = 0.01 * jnp.log((x0 - A_POINT[0]) ** 2 + (x1 - A_POINT[1]) ** 2)
    sing_b = 0.01 * jnp.log((x0 - B_POINT[0]) ** 2 + (x1 - B_POINT[1]) ** 2)

    out = sing_a * p[0:1, :] + sing_b * p[1:2, :] + p[2:3, :]          # (1, TB)
    o_ref[...] = out.astype(o_ref.dtype)


def pack_params(linears):
    """linears: 9 tuples (weight (out, in), bias (out,)) in module order.

    Returns two (8,128)-aligned parameter slabs:
      slab (H3, 128): cols 0..95 block-diag W2; cols 96..100 packed
                      {W1 col0, W1 col1, b1, b2, b3}.
      w3_f (8, H3):   row j holds branch j's scalar-head weights in its band.
    """
    ws = [jnp.asarray(w, jnp.float32) for w, _ in linears]
    bs = [jnp.asarray(c, jnp.float32) for _, c in linears]

    slab = jnp.zeros((H3, 128), jnp.float32)
    for j in range(NB):
        slab = slab.at[j * H:(j + 1) * H, j * H:(j + 1) * H].set(ws[3 * j + 1])
    w1_all = jnp.concatenate([ws[0], ws[3], ws[6]], axis=0)        # (H3, 2)
    slab = slab.at[:, _COL_W1C0].set(w1_all[:, 0])
    slab = slab.at[:, _COL_W1C1].set(w1_all[:, 1])
    slab = slab.at[:, _COL_B1].set(jnp.concatenate([bs[0], bs[3], bs[6]]))
    slab = slab.at[:, _COL_B2].set(jnp.concatenate([bs[1], bs[4], bs[7]]))
    slab = slab.at[0:NB, _COL_B3].set(jnp.stack([bs[2][0], bs[5][0], bs[8][0]]))

    w3_f = jnp.zeros((8, H3), jnp.float32)
    for j in range(NB):
        w3_f = w3_f.at[j, j * H:(j + 1) * H].set(ws[3 * j + 2][0])

    return slab, w3_f


def singularity_forward(x, packed, *, max_batch_tile=4096, use_bf16_matmul=False):
    """x: (B, 2) float32 -> (B,) float32 energy (Singularity_model.forward)."""
    slab, w3_f = packed
    b = x.shape[0]

    # Tile choice: per-grid-step overhead dominates this tiny kernel, so use
    # the biggest lane tile the batch allows, but keep >= 2 grid steps when
    # possible so the "parallel" grid axis shards across v7x's 2 TensorCores.
    bp128 = _round_up(b, 128)
    tb = max(128, min(max_batch_tile, _round_up(pl.cdiv(bp128, 2), 128)))
    bp = _round_up(b, tb)

    # Transpose + pad so batch sits on the 128-lane axis.
    x_t = jnp.zeros((2, bp), jnp.float32).at[:, :b].set(
        jnp.asarray(x, jnp.float32).T)

    # VMEM estimate: three f32 (H3, tb) intermediates + double-buffered x/out
    # tiles + two parameter slabs.  Raise the scoped limit only when the tile
    # would exceed the smallest (v5e, 16 MiB) default.
    est_vmem = 4 * tb * (3 * H3 + 6) + 8 * (H3 * 128 + 8 * H3) + (1 << 20)
    vmem_limit = None
    if est_vmem > 14 * 1024 * 1024:
        vmem_limit = int(min(2 * est_vmem, 64 * 1024 * 1024))

    kernel = functools.partial(_singularity_kernel, use_bf16=use_bf16_matmul)
    flops = 2 * bp * (2 * H3 + H3 * H3 + 8 * H3)
    out = pl.pallas_call(
        kernel,
        out_shape=jax.ShapeDtypeStruct((1, bp), jnp.float32),
        grid=(bp // tb,),
        in_specs=[
            pl.BlockSpec((2, tb), lambda i: (0, i)),      # x tile (batch on lanes)
            pl.BlockSpec((H3, 128), lambda i: (0, 0)),    # W2 block-diag + misc
            pl.BlockSpec((8, H3), lambda i: (0, 0)),      # fused W3 heads
        ],
        out_specs=pl.BlockSpec((1, tb), lambda i: (0, i)),
        compiler_params=pltpu.CompilerParams(
            dimension_semantics=("parallel",),
            vmem_limit_bytes=vmem_limit),
        cost_estimate=pl.CostEstimate(
            flops=flops,
            transcendentals=bp * (H + 2),                 # tanh on H rows + 2 logs
            bytes_accessed=12 * bp + 4 * (H3 * 128 + 8 * H3)),
    )(x_t, slab, w3_f)
    return out[0, :b]


def init_linears(key):
    """Nine nn.Linear params in module order; layers = [2, H, H] per branch."""
    shapes = [(2, H), (H, H), (H, 1)] * NB
    lin = []
    for k, (fan_in, fan_out) in enumerate(shapes):
        key, kw, kb = jax.random.split(key, 3)
        limit = (6.0 / (fan_in + fan_out)) ** 0.5
        w = jax.random.uniform(kw, (fan_out, fan_in), jnp.float32, -limit, limit)
        if k < NB:
            # the original module xavier-inits / zero-biases only the first
            # len(layers) linears; the rest keep their default (nonzero) bias.
            bias = jnp.zeros((fan_out,), jnp.float32)
        else:
            bound = 1.0 / (fan_in ** 0.5)
            bias = jax.random.uniform(kb, (fan_out,), jnp.float32, -bound, bound)
        lin.append((w, bias))
    return lin


def reference_forward(x, linears):
    """Pure-JAX transcription of Singularity_model.forward (layers=[2,H,H])."""
    def linear(idx, a):
        w, bias = linears[idx]
        return a @ w.T + bias

    def singularity(pt):
        return 0.01 * jnp.log((x[:, 0] - pt[0]) ** 2 + (x[:, 1] - pt[1]) ** 2)

    out = jnp.zeros((x.shape[0],), jnp.float32)
    idx = 0
    for j in range(3):
        a = x
        for ll in range(2):                      # len(layers) - 1
            a = linear(idx, a)
            idx += 1
            if not (ll == 1 and j == 2):
                a = jnp.maximum(a, 0.0)
        if j == 0:
            a = linear(idx, a)
            idx += 1
            a = singularity(A_POINT) * a[:, 0]
        elif j == 1:
            a = linear(idx, a)
            idx += 1
            a = singularity(B_POINT) * a[:, 0]
        else:
            a = jnp.tanh(a)
            a = linear(idx, a)
            idx += 1
            a = a[:, 0]
        out = out + a
    return out


if __name__ == "__main__":
    key = jax.random.PRNGKey(0)
    kx, kx2, kp = jax.random.split(key, 3)

    linears = init_linears(kp)
    packed = pack_params(linears)

    # Small deterministic batch of 2-D samples (what the module expects).
    B = 8
    x = jax.random.normal(kx, (B, 2), jnp.float32)
    out = jax.block_until_ready(singularity_forward(x, packed))
    ref = reference_forward(x, linears)
    assert out.shape == (B,)
    assert jnp.allclose(out, ref, atol=1e-4, rtol=1e-4), (out, ref)

    # Larger batch: exercises batch padding and a multi-step "parallel" grid.
    B2 = 300
    x2 = jax.random.normal(kx2, (B2, 2), jnp.float32)
    out2 = jax.block_until_ready(singularity_forward(x2, packed))
    ref2 = reference_forward(x2, linears)
    assert out2.shape == (B2,)
    assert jnp.allclose(out2, ref2, atol=1e-4, rtol=1e-4), \
        float(jnp.max(jnp.abs(out2 - ref2)))

    # Optional bf16-MXU path (fewer MXU pushes); validated at a loose tolerance.
    out_bf16 = jax.block_until_ready(
        singularity_forward(x2, packed, use_bf16_matmul=True))
    assert out_bf16.shape == (B2,)
    assert bool(jnp.all(jnp.isfinite(out_bf16)))
    assert float(jnp.max(jnp.abs(out_bf16 - ref2))) < 0.15

    print("KERNEL_OK")
</pallas_src>

<mosaic_0001>
module attributes {stable_mosaic.version = 11 : i64} {
  func.func @_singularity_kernel(%arg0: i32, %arg1: memref<2x128xf32, #tpu.memory_space<vmem>>, %arg2: memref<96x128xf32, #tpu.memory_space<vmem>>, %arg3: memref<8x96xf32, #tpu.memory_space<vmem>>, %arg4: memref<1x128xf32, #tpu.memory_space<vmem>>) attributes {dimension_semantics = [#tpu.dimension_semantics<parallel>], iteration_bounds = array<i64: 1>, scalar_prefetch = 0 : i64, scratch_operands = 0 : i64, tpu.core_type = #tpu.core_type<tc>, window_params = [{transform_indices = @transform_0, window_bounds = array<i64: 2, 128>}, {pipeline_mode = #tpu.pipeline_mode<synchronous>, transform_indices = @transform_1, window_bounds = array<i64: 96, 128>}, {pipeline_mode = #tpu.pipeline_mode<synchronous>, transform_indices = @transform_2, window_bounds = array<i64: 8, 96>}, {transform_indices = @transform_3, window_bounds = array<i64: 1, 128>}]} {
    %c0 = arith.constant 0 : index
    %c0_0 = arith.constant 0 : index
    %0 = vector.load %arg1[%c0, %c0_0] : memref<2x128xf32, #tpu.memory_space<vmem>>, vector<1x128xf32>
    %c1 = arith.constant 1 : index
    %c0_1 = arith.constant 0 : index
    %1 = vector.load %arg1[%c1, %c0_1] : memref<2x128xf32, #tpu.memory_space<vmem>>, vector<1x128xf32>
    %c0_2 = arith.constant 0 : index
    %c0_3 = arith.constant 0 : index
    %2 = vector.load %arg2[%c0_2, %c0_3] : memref<96x128xf32, #tpu.memory_space<vmem>>, vector<96x96xf32>
    %c0_4 = arith.constant 0 : index
    %c96 = arith.constant 96 : index
    %3 = vector.load %arg2[%c0_4, %c96] : memref<96x128xf32, #tpu.memory_space<vmem>>, vector<96x1xf32>
    %c0_5 = arith.constant 0 : index
    %c97 = arith.constant 97 : index
    %4 = vector.load %arg2[%c0_5, %c97] : memref<96x128xf32, #tpu.memory_space<vmem>>, vector<96x1xf32>
    %c0_6 = arith.constant 0 : index
    %c98 = arith.constant 98 : index
    %5 = vector.load %arg2[%c0_6, %c98] : memref<96x128xf32, #tpu.memory_space<vmem>>, vector<96x1xf32>
    %c0_7 = arith.constant 0 : index
    %c99 = arith.constant 99 : index
    %6 = vector.load %arg2[%c0_7, %c99] : memref<96x128xf32, #tpu.memory_space<vmem>>, vector<96x1xf32>
    %c0_8 = arith.constant 0 : index
    %c100 = arith.constant 100 : index
    %7 = vector.load %arg2[%c0_8, %c100] : memref<96x128xf32, #tpu.memory_space<vmem>>, vector<8x1xf32>
    %8 = vector.broadcast %3 : vector<96x1xf32> to vector<96x128xf32>
    %9 = vector.broadcast %0 : vector<1x128xf32> to vector<96x128xf32>
    %10 = arith.mulf %8, %9 : vector<96x128xf32>
    %11 = vector.broadcast %4 : vector<96x1xf32> to vector<96x128xf32>
    %12 = vector.broadcast %1 : vector<1x128xf32> to vector<96x128xf32>
    %13 = arith.mulf %11, %12 : vector<96x128xf32>
    %14 = arith.addf %10, %13 : vector<96x128xf32>
    %15 = vector.broadcast %5 : vector<96x1xf32> to vector<96x128xf32>
    %16 = arith.addf %14, %15 : vector<96x128xf32>
    %cst = arith.constant 0.000000e+00 : f32
    %17 = vector.broadcast %cst : f32 to vector<96x128xf32>
    %18 = arith.maximumf %16, %17 : vector<96x128xf32>
    %cst_9 = arith.constant dense<0.000000e+00> : vector<96x128xf32>
    %19 = tpu.matmul %2, %18, %cst_9 {dimension_numbers = #tpu.dot_dimension_numbers<[1], [0], [0], [1], [0, 0, 1, 1], [], []>} : vector<96x96xf32>, vector<96x128xf32>, vector<96x128xf32> -> vector<96x128xf32>
    %20 = vector.broadcast %6 : vector<96x1xf32> to vector<96x128xf32>
    %21 = arith.addf %19, %20 : vector<96x128xf32>
    %22 = vector.extract_strided_slice %21 {offsets = [0, 0], sizes = [64, 128], strides = [1, 1]} : vector<96x128xf32> to vector<64x128xf32>
    %cst_10 = arith.constant 0.000000e+00 : f32
    %23 = vector.broadcast %cst_10 : f32 to vector<64x128xf32>
    %24 = arith.maximumf %22, %23 : vector<64x128xf32>
    %25 = vector.extract_strided_slice %21 {offsets = [64, 0], sizes = [32, 128], strides = [1, 1]} : vector<96x128xf32> to vector<32x128xf32>
    %26 = math.tanh %25 : vector<32x128xf32>
    %c0_11 = arith.constant 0 : index
    %c0_12 = arith.constant 0 : index
    %27 = vector.load %arg3[%c0_11, %c0_12] : memref<8x96xf32, #tpu.memory_space<vmem>>, vector<8x64xf32>
    %cst_13 = arith.constant dense<0.000000e+00> : vector<8x128xf32>
    %28 = tpu.matmul %27, %24, %cst_13 {dimension_numbers = #tpu.dot_dimension_numbers<[1], [0], [0], [1], [0, 0, 1, 1], [], []>} : vector<8x64xf32>, vector<64x128xf32>, vector<8x128xf32> -> vector<8x128xf32>
    %c0_14 = arith.constant 0 : index
    %c64 = arith.constant 64 : index
    %29 = vector.load %arg3[%c0_14, %c64] : memref<8x96xf32, #tpu.memory_space<vmem>>, vector<8x32xf32>
    %cst_15 = arith.constant dense<0.000000e+00> : vector<8x128xf32>
    %30 = tpu.matmul %29, %26, %cst_15 {dimension_numbers = #tpu.dot_dimension_numbers<[1], [0], [0], [1], [0, 0, 1, 1], [], []>} : vector<8x32xf32>, vector<32x128xf32>, vector<8x128xf32> -> vector<8x128xf32>
    %31 = arith.addf %28, %30 : vector<8x128xf32>
    %32 = vector.broadcast %7 : vector<8x1xf32> to vector<8x128xf32>
    %33 = arith.addf %31, %32 : vector<8x128xf32>
    %cst_16 = arith.constant -1.000000e+00 : f32
    %34 = vector.broadcast %cst_16 : f32 to vector<1x128xf32>
    %35 = arith.subf %0, %34 : vector<1x128xf32>
    %36 = arith.mulf %35, %35 : vector<1x128xf32>
    %cst_17 = arith.constant 0.000000e+00 : f32
    %37 = vector.broadcast %cst_17 : f32 to vector<1x128xf32>
    %38 = arith.subf %1, %37 : vector<1x128xf32>
    %39 = arith.mulf %38, %38 : vector<1x128xf32>
    %40 = arith.addf %36, %39 : vector<1x128xf32>
    %41 = math.log %40 : vector<1x128xf32>
    %cst_18 = arith.constant 0.00999999977 : f32
    %42 = vector.broadcast %cst_18 : f32 to vector<1x128xf32>
    %43 = arith.mulf %42, %41 : vector<1x128xf32>
    %cst_19 = arith.constant 1.000000e+00 : f32
    %44 = vector.broadcast %cst_19 : f32 to vector<1x128xf32>
    %45 = arith.subf %0, %44 : vector<1x128xf32>
    %46 = arith.mulf %45, %45 : vector<1x128xf32>
    %cst_20 = arith.constant 0.000000e+00 : f32
    %47 = vector.broadcast %cst_20 : f32 to vector<1x128xf32>
    %48 = arith.subf %1, %47 : vector<1x128xf32>
    %49 = arith.mulf %48, %48 : vector<1x128xf32>
    %50 = arith.addf %46, %49 : vector<1x128xf32>
    %51 = math.log %50 : vector<1x128xf32>
    %cst_21 = arith.constant 0.00999999977 : f32
    %52 = vector.broadcast %cst_21 : f32 to vector<1x128xf32>
    %53 = arith.mulf %52, %51 : vector<1x128xf32>
    %54 = vector.extract_strided_slice %33 {offsets = [0, 0], sizes = [1, 128], strides = [1, 1]} : vector<8x128xf32> to vector<1x128xf32>
    %55 = arith.mulf %43, %54 : vector<1x128xf32>
    %56 = vector.extract_strided_slice %33 {offsets = [1, 0], sizes = [1, 128], strides = [1, 1]} : vector<8x128xf32> to vector<1x128xf32>
    %57 = arith.mulf %53, %56 : vector<1x128xf32>
    %58 = arith.addf %55, %57 : vector<1x128xf32>
    %59 = vector.extract_strided_slice %33 {offsets = [2, 0], sizes = [1, 128], strides = [1, 1]} : vector<8x128xf32> to vector<1x128xf32>
    %60 = arith.addf %58, %59 : vector<1x128xf32>
    %c0_22 = arith.constant 0 : index
    %c0_23 = arith.constant 0 : index
    %61 = vector.load %arg4[%c0_22, %c0_23] : memref<1x128xf32, #tpu.memory_space<vmem>>, vector<1x128xf32>
    tpu.vector_store %arg4[%c0_22, %c0_23], %60 {strides = array<i32>} : memref<1x128xf32, #tpu.memory_space<vmem>>, vector<1x128xf32>,
    return
  }
  func.func @transform_0(%arg0: i32) -> (i32, i32) {
    %c0_i32 = arith.constant 0 : i32
    %c0_i32_0 = arith.constant 0 : i32
    return %c0_i32, %arg0 : i32, i32
  }
  func.func @transform_1(%arg0: i32) -> (i32, i32) {
    %c0_i32 = arith.constant 0 : i32
    %c0_i32_0 = arith.constant 0 : i32
    %c0_i32_1 = arith.constant 0 : i32
    return %c0_i32, %c0_i32_0 : i32, i32
  }
  func.func @transform_2(%arg0: i32) -> (i32, i32) {
    %c0_i32 = arith.constant 0 : i32
    %c0_i32_0 = arith.constant 0 : i32
    %c0_i32_1 = arith.constant 0 : i32
    return %c0_i32, %c0_i32_0 : i32, i32
  }
  func.func @transform_3(%arg0: i32) -> (i32, i32) {
    %c0_i32 = arith.constant 0 : i32
    %c0_i32_0 = arith.constant 0 : i32
    return %c0_i32, %arg0 : i32, i32
  }
}

</mosaic_0001>

<llo_original>
// kernel: tpu_custom_call.1
$region0: #{tpu_custom_call.1}
  #allocation0 [shape = 'u32[]', space=smem, size = 0x4, offset = 0x4, fixed_abs, tag = 'smem constant byte address 0x4 - core index']
  #allocation1 [shape = 'u32[144,128]{1,0:T(1,128)}', space=vmem, size = 0x12000, scoped, tag = 'internal scratch']
  %s0 = inlined_call_operand.hbm [shape: f32[2,128], index: 0, kind: input, shape index: {}]
  %s1 = inlined_call_operand.hbm [shape: f32[96,128], index: 1, kind: input, shape index: {}]
  %s2 = inlined_call_operand.hbm [shape: f32[8,96], index: 2, kind: input, shape index: {}]
  %s3 = inlined_call_operand.hbm [shape: f32[1,128], index: 3, kind: output, shape index: {}]
  %s4 = sld [smem:[#allocation0]]
  $region34: #{tpu_custom_call.1} parent=0
    _
  %s6 = ssub.s32 1, %s4
  %s7 = scalar_select 0, %s6, %s4
  $region1: #{tpu_custom_call.1} parent=0
    #allocation2 [shape = 'u8[1024]{0}', space=vmem, size = 0x400, scoped, tag = 'input window, operand 0, single buffered']
    #allocation3 [shape = 's32[1]{0}', space=sflag, size = 0x4, scoped, tag = 'scoped memory for tpu_custom_call.1']
    #allocation4 [shape = 's32[1]{0}', space=sflag, size = 0x4, scoped, tag = 'scoped memory for tpu_custom_call.1']
    #allocation5 [shape = 'u8[49152]{0}', space=vmem, size = 0xc000, scoped, tag = 'input window, operand 1, single buffered']
    #allocation6 [shape = 's32[1]{0}', space=sflag, size = 0x4, scoped, tag = 'scoped memory for tpu_custom_call.1']
    #allocation7 [shape = 'u8[4096]{0}', space=vmem, size = 0x1000, scoped, tag = 'input window, operand 2, single buffered']
    #allocation8 [shape = 'u8[512]{0}', space=vmem, size = 0x400, scoped, tag = 'output window, operand 0, single buffered']
    %8 = vsyncpa [#allocation3], 0
    %9 = vsyncpa [#allocation6], 0
    %10 = vsyncpa [#allocation4], 0
    // Predicated region
    $region2: #{tpu_custom_call.1} parent=1 // pred_check
      _
    $region3: #{tpu_custom_call.1} parent=1 // pred_check_branch
      %12 = sbr.rel (0) target = $region5
    $region4: #{tpu_custom_call.1} parent=1 // pred_region
      %s14 = ssub.s32 32, 32
      %15 = vsyncadd [#allocation3], %s14
      %s17 = sshll.u32 [#allocation2], 4
      %s18 = int_to_ptr.vmem [resolvable:$true] %s17
      %20 = dma.hbm_to_vmem [thread:$0]  %s0, 32, %s18, [#allocation3]
    $region5: #{tpu_custom_call.1} parent=1 // pred_fallthru
      _
    // Predicated region
    $region6: #{tpu_custom_call.1} parent=1 // pred_check
      _
    $region7: #{tpu_custom_call.1} parent=1 // pred_check_branch
      %22 = sbr.rel (0) target = $region9
    $region8: #{tpu_custom_call.1} parent=1 // pred_region
      %s24 = ssub.s32 1536, 1536
      %25 = vsyncadd [#allocation6], %s24
      %s26 = sshll.u32 [#allocation5], 4
      %s27 = int_to_ptr.vmem [resolvable:$true] %s26
      %32 = dma.hbm_to_vmem [thread:$0]  %s1, 1536, %s27, [#allocation6], 128, 128, 8
    $region9: #{tpu_custom_call.1} parent=1 // pred_fallthru
      _
    // Predicated region
    $region10: #{tpu_custom_call.1} parent=1 // pred_check
      _
    $region11: #{tpu_custom_call.1} parent=1 // pred_check_branch
      %34 = sbr.rel (0) target = $region13
    $region12: #{tpu_custom_call.1} parent=1 // pred_region
      %s36 = ssub.s32 128, 128
      %37 = vsyncadd [#allocation6], %s36
      %s39 = sshll.u32 [#allocation7], 4
      %s40 = int_to_ptr.vmem [resolvable:$true] %s39
      %42 = dma.hbm_to_vmem [thread:$0]  %s2, 128, %s40, [#allocation6]
    $region13: #{tpu_custom_call.1} parent=1 // pred_fallthru
      _
    // Predicated region
    $region14: #{tpu_custom_call.1} parent=1 // pred_check
      _
    $region15: #{tpu_custom_call.1} parent=1 // pred_check_branch
      %44 = sbr.rel (0) target = $region17
    $region16: #{tpu_custom_call.1} parent=1 // pred_region
      %45 = dma.done [#allocation3], 32
    $region17: #{tpu_custom_call.1} parent=1 // pred_fallthru
      _
    // Predicated region
    $region18: #{tpu_custom_call.1} parent=1 // pred_check
      _
    $region19: #{tpu_custom_call.1} parent=1 // pred_check_branch
      %47 = sbr.rel (0) target = $region21
    $region20: #{tpu_custom_call.1} parent=1 // pred_region
      %48 = dma.done [#allocation6], 1536
    $region21: #{tpu_custom_call.1} parent=1 // pred_fallthru
      _
    // Predicated region
    $region22: #{tpu_custom_call.1} parent=1 // pred_check
      _
    $region23: #{tpu_custom_call.1} parent=1 // pred_check_branch
      %50 = sbr.rel (0) target = $region25
    $region24: #{tpu_custom_call.1} parent=1 // pred_region
      %51 = dma.done [#allocation6], 128
    $region25: #{tpu_custom_call.1} parent=1 // pred_fallthru
      _
    %v52 = vld [vmem:[#allocation2] sm:$0x1]
    %v53 = vld [vmem:[#allocation2 + $0x1] sm:$0x1]
    %v54 = vld [vmem:[#allocation5] sm:$0xff]
    %v55 = vld [vmem:[#allocation5 + $0x8] sm:$0xff]
    %v56 = vld [vmem:[#allocation5 + $0x10] sm:$0xff]
    %v57 = vld [vmem:[#allocation5 + $0x18] sm:$0xff]
    %v58 = vld [vmem:[#allocation5 + $0x20] sm:$0xff]
    %v59 = vld [vmem:[#allocation5 + $0x28] sm:$0xff]
    %v60 = vld [vmem:[#allocation5 + $0x30] sm:$0xff]
    %v61 = vld [vmem:[#allocation5 + $0x38] sm:$0xff]
    %v62 = vld [vmem:[#allocation5 + $0x40] sm:$0xff]
    %v63 = vld [vmem:[#allocation5 + $0x48] sm:$0xff]
    %v64 = vld [vmem:[#allocation5 + $0x50] sm:$0xff]
    %v65 = vld [vmem:[#allocation5 + $0x58] sm:$0xff]
    %v66 = vld [vmem:[#allocation5] sm:$0xff]
    %68 = vset.pattern.permute.xlu0 96
    %69 = vperm.xlu0 %68, %v54
    %v70 = vpop.permute.xlu0 %69
    %73 = vset.pattern.permute.xlu0 96
    %74 = vperm.xlu0 %73, %v55
    %v75 = vpop.permute.xlu0 %74
    %78 = vset.pattern.permute.xlu0 96
    %79 = vperm.xlu0 %78, %v56
    %v80 = vpop.permute.xlu0 %79
    %83 = vset.pattern.permute.xlu0 96
    %84 = vperm.xlu0 %83, %v57
    %v85 = vpop.permute.xlu0 %84
    %88 = vset.pattern.permute.xlu0 96
    %89 = vperm.xlu0 %88, %v58
    %v90 = vpop.permute.xlu0 %89
    %93 = vset.pattern.permute.xlu0 96
    %94 = vperm.xlu0 %93, %v59
    %v95 = vpop.permute.xlu0 %94
    %98 = vset.pattern.permute.xlu0 96
    %99 = vperm.xlu0 %98, %v60
    %v100 = vpop.permute.xlu0 %99
    %103 = vset.pattern.permute.xlu0 96
    %104 = vperm.xlu0 %103, %v61
    %v105 = vpop.permute.xlu0 %104
    %108 = vset.pattern.permute.xlu0 96
    %109 = vperm.xlu0 %108, %v62
    %v110 = vpop.permute.xlu0 %109
    %113 = vset.pattern.permute.xlu0 96
    %114 = vperm.xlu0 %113, %v63
    %v115 = vpop.permute.xlu0 %114
    %118 = vset.pattern.permute.xlu0 96
    %119 = vperm.xlu0 %118, %v64
    %v120 = vpop.permute.xlu0 %119
    %123 = vset.pattern.permute.xlu0 96
    %124 = vperm.xlu0 %123, %v65
    %v125 = vpop.permute.xlu0 %124
    %v127 = vlaneseq
    %v128 = vshrl.u32 %v127, 7
    %v129 = vsub.s32 0, %v128
    %v130 = vrot.slane %v52, %v129
    %v131 = vmul.f32 %v70, %v130
    %v132 = vmul.f32 %v75, %v130
    %v133 = vmul.f32 %v80, %v130
    %v134 = vmul.f32 %v85, %v130
    %v135 = vmul.f32 %v90, %v130
    %v136 = vmul.f32 %v95, %v130
    %v137 = vmul.f32 %v100, %v130
    %v138 = vmul.f32 %v105, %v130
    %v139 = vmul.f32 %v110, %v130
    %v140 = vmul.f32 %v115, %v130
    %v141 = vmul.f32 %v120, %v130
    %v142 = vmul.f32 %v125, %v130
    %143 = vset.pattern.permute.xlu0 97
    %144 = vperm.xlu0 %143, %v54
    %v145 = vpop.permute.xlu0 %144
    %147 = vset.pattern.permute.xlu0 97
    %148 = vperm.xlu0 %147, %v55
    %v149 = vpop.permute.xlu0 %148
    %151 = vset.pattern.permute.xlu0 97
    %152 = vperm.xlu0 %151, %v56
    %v153 = vpop.permute.xlu0 %152
    %155 = vset.pattern.permute.xlu0 97
    %156 = vperm.xlu0 %155, %v57
    %v157 = vpop.permute.xlu0 %156
    %159 = vset.pattern.permute.xlu0 97
    %160 = vperm.xlu0 %159, %v58
    %v161 = vpop.permute.xlu0 %160
    %163 = vset.pattern.permute.xlu0 97
    %164 = vperm.xlu0 %163, %v59
    %v165 = vpop.permute.xlu0 %164
    %167 = vset.pattern.permute.xlu0 97
    %168 = vperm.xlu0 %167, %v60
    %v169 = vpop.permute.xlu0 %168
    %171 = vset.pattern.permute.xlu0 97
    %172 = vperm.xlu0 %171, %v61
    %v173 = vpop.permute.xlu0 %172
    %175 = vset.pattern.permute.xlu0 97
    %176 = vperm.xlu0 %175, %v62
    %v177 = vpop.permute.xlu0 %176
    %179 = vset.pattern.permute.xlu0 97
    %180 = vperm.xlu0 %179, %v63
    %v181 = vpop.permute.xlu0 %180
    %183 = vset.pattern.permute.xlu0 97
    %184 = vperm.xlu0 %183, %v64
    %v185 = vpop.permute.xlu0 %184
    %187 = vset.pattern.permute.xlu0 97
    %188 = vperm.xlu0 %187, %v65
    %v189 = vpop.permute.xlu0 %188
    %v191 = vlaneseq
    %v192 = vshrl.u32 %v191, 7
    %v193 = vsub.s32 0, %v192
    %v194 = vrot.slane %v53, %v193
    %v195 = vmul.f32 %v145, %v194
    %v196 = vmul.f32 %v149, %v194
    %v197 = vmul.f32 %v153, %v194
    %v198 = vmul.f32 %v157, %v194
    %v199 = vmul.f32 %v161, %v194
    %v200 = vmul.f32 %v165, %v194
    %v201 = vmul.f32 %v169, %v194
    %v202 = vmul.f32 %v173, %v194
    %v203 = vmul.f32 %v177, %v194
    %v204 = vmul.f32 %v181, %v194
    %v205 = vmul.f32 %v185, %v194
    %v206 = vmul.f32 %v189, %v194
    %v207 = vadd.f32 %v131, %v195
    %v208 = vadd.f32 %v132, %v196
    %v209 = vadd.f32 %v133, %v197
    %v210 = vadd.f32 %v134, %v198
    %v211 = vadd.f32 %v135, %v199
    %v212 = vadd.f32 %v136, %v200
    %v213 = vadd.f32 %v137, %v201
    %v214 = vadd.f32 %v138, %v202
    %v215 = vadd.f32 %v139, %v203
    %v216 = vadd.f32 %v140, %v204
    %v217 = vadd.f32 %v141, %v205
    %v218 = vadd.f32 %v142, %v206
    %219 = vset.pattern.permute.xlu0 98
    %220 = vperm.xlu0 %219, %v54
    %v221 = vpop.permute.xlu0 %220
    %223 = vset.pattern.permute.xlu0 98
    %224 = vperm.xlu0 %223, %v55
    %v225 = vpop.permute.xlu0 %224
    %227 = vset.pattern.permute.xlu0 98
    %228 = vperm.xlu0 %227, %v56
    %v229 = vpop.permute.xlu0 %228
    %231 = vset.pattern.permute.xlu0 98
    %232 = vperm.xlu0 %231, %v57
    %v233 = vpop.permute.xlu0 %232
    %235 = vset.pattern.permute.xlu0 98
    %236 = vperm.xlu0 %235, %v58
    %v237 = vpop.permute.xlu0 %236
    %239 = vset.pattern.permute.xlu0 98
    %240 = vperm.xlu0 %239, %v59
    %v241 = vpop.permute.xlu0 %240
    %243 = vset.pattern.permute.xlu0 98
    %244 = vperm.xlu0 %243, %v60
    %v245 = vpop.permute.xlu0 %244
    %247 = vset.pattern.permute.xlu0 98
    %248 = vperm.xlu0 %247, %v61
    %v249 = vpop.permute.xlu0 %248
    %251 = vset.pattern.permute.xlu0 98
    %252 = vperm.xlu0 %251, %v62
    %v253 = vpop.permute.xlu0 %252
    %255 = vset.pattern.permute.xlu0 98
    %256 = vperm.xlu0 %255, %v63
    %v257 = vpop.permute.xlu0 %256
    %259 = vset.pattern.permute.xlu0 98
    %260 = vperm.xlu0 %259, %v64
    %v261 = vpop.permute.xlu0 %260
    %263 = vset.pattern.permute.xlu0 98
    %264 = vperm.xlu0 %263, %v65
    %v265 = vpop.permute.xlu0 %264
    %v267 = vadd.f32 %v207, %v221
    %v268 = vadd.f32 %v208, %v225
    %v269 = vadd.f32 %v209, %v229
    %v270 = vadd.f32 %v210, %v233
    %v271 = vadd.f32 %v211, %v237
    %v272 = vadd.f32 %v212, %v241
    %v273 = vadd.f32 %v213, %v245
    %v274 = vadd.f32 %v214, %v249
    %v275 = vadd.f32 %v215, %v253
    %v276 = vadd.f32 %v216, %v257
    %v277 = vadd.f32 %v217, %v261
    %v278 = vadd.f32 %v218, %v265
    %v279 = vmax.f32 %v267, 0.0
    %v280 = vmax.f32 %v268, 0.0
    %v281 = vmax.f32 %v269, 0.0
    %v282 = vmax.f32 %v270, 0.0
    %v283 = vmax.f32 %v271, 0.0
    %v284 = vmax.f32 %v272, 0.0
    %v285 = vmax.f32 %v273, 0.0
    %v286 = vmax.f32 %v274, 0.0
    %v287 = vmax.f32 %v275, 0.0
    %v288 = vmax.f32 %v276, 0.0
    %v289 = vmax.f32 %v277, 0.0
    %v290 = vmax.f32 %v278, 0.0
    %291 = vset.pattern.permute.xlu0 99
    %292 = vperm.xlu0 %291, %v54
    %v293 = vpop.permute.xlu0 %292
    %295 = vset.pattern.permute.xlu0 99
    %296 = vperm.xlu0 %295, %v55
    %v297 = vpop.permute.xlu0 %296
    %299 = vset.pattern.permute.xlu0 99
    %300 = vperm.xlu0 %299, %v56
    %v301 = vpop.permute.xlu0 %300
    %303 = vset.pattern.permute.xlu0 99
    %304 = vperm.xlu0 %303, %v57
    %v305 = vpop.permute.xlu0 %304
    %307 = vset.pattern.permute.xlu0 99
    %308 = vperm.xlu0 %307, %v58
    %v309 = vpop.permute.xlu0 %308
    %311 = vset.pattern.permute.xlu0 99
    %312 = vperm.xlu0 %311, %v59
    %v313 = vpop.permute.xlu0 %312
    %315 = vset.pattern.permute.xlu0 99
    %316 = vperm.xlu0 %315, %v60
    %v317 = vpop.permute.xlu0 %316
    %319 = vset.pattern.permute.xlu0 99
    %320 = vperm.xlu0 %319, %v61
    %v321 = vpop.permute.xlu0 %320
    %323 = vset.pattern.permute.xlu0 99
    %324 = vperm.xlu0 %323, %v62
    %v325 = vpop.permute.xlu0 %324
    %327 = vset.pattern.permute.xlu0 99
    %328 = vperm.xlu0 %327, %v63
    %v329 = vpop.permute.xlu0 %328
    %331 = vset.pattern.permute.xlu0 99
    %332 = vperm.xlu0 %331, %v64
    %v333 = vpop.permute.xlu0 %332
    %335 = vset.pattern.permute.xlu0 99
    %336 = vperm.xlu0 %335, %v65
    %v337 = vpop.permute.xlu0 %336
    %vm339 = vcmask 785408
    %v340 = vsel %vm339, %v54, 0
    %v342 = vsel %vm339, %v55, 0
    %v344 = vsel %vm339, %v56, 0
    %v346 = vsel %vm339, %v57, 0
    %v348 = vsel %vm339, %v58, 0
    %v350 = vsel %vm339, %v59, 0
    %v352 = vsel %vm339, %v60, 0
    %v354 = vsel %vm339, %v61, 0
    %v356 = vsel %vm339, %v62, 0
    %v358 = vsel %vm339, %v63, 0
    %v360 = vsel %vm339, %v64, 0
    %v362 = vsel %vm339, %v65, 0
    %364 = vmatprep.subr.mxu0 0.0
    %365 = vmatpush1.msra.mxu0 %v279
    %366 = vmatprep.subr.mxu0 0.0
    %367 = vmatpush1.msra.mxu0 %v280
    %368 = vmatprep.subr.mxu0 0.0
    %369 = vmatpush1.msra.mxu0 %v281
    %370 = vmatprep.subr.mxu0 0.0
    %371 = vmatpush1.msra.mxu0 %v282
    %372 = vmatprep.subr.mxu0 0.0
    %373 = vmatpush1.msra.mxu0 %v283
    %374 = vmatprep.subr.mxu0 0.0
    %375 = vmatpush1.msra.mxu0 %v284
    %376 = vmatprep.subr.mxu0 0.0
    %377 = vmatpush1.msra.mxu0 %v285
    %378 = vmatprep.subr.mxu0 0.0
    %379 = vmatpush1.msra.mxu0 %v286
    %380 = vmatprep.subr.mxu0 0.0
    %381 = vmatpush1.msra.mxu0 %v287
    %382 = vmatprep.subr.mxu0 0.0
    %383 = vmatpush1.msra.mxu0 %v288
    %384 = vmatprep.subr.mxu0 0.0
    %385 = vmatpush1.msra.mxu0 %v289
    %386 = vmatprep.subr.mxu0 0.0
    %387 = vmatpush1.msra.mxu0 %v290
    %388 = vmatprep.subr.mxu0 0.0
    %389 = vmatpush1.msra.mxu0 0.0
    %390 = vmatprep.subr.mxu0 0.0
    %391 = vmatpush1.msra.mxu0 0.0
    %392 = vmatprep.subr.mxu0 0.0
    %393 = vmatpush1.msra.mxu0 0.0
    %394 = vmatprep.subr.mxu0 0.0
    %395 = vmatpush1.msra.mxu0 0.0
    %396 = vmatprep.subr.mxu0 0.0
    %397 = vmatpush1.msra.mxu0 0.0
    %398 = vmatprep.subr.mxu0 0.0
    %399 = vmatpush1.msra.mxu0 0.0
    %400 = vmatprep.subr.mxu0 0.0
    %401 = vmatpush1.msra.mxu0 0.0
    %402 = vmatprep.subr.mxu0 0.0
    %403 = vmatpush1.msra.mxu0 0.0
    %404 = vmatprep.subr.mxu0 0.0
    %405 = vmatpush1.msra.mxu0 0.0
    %406 = vmatprep.subr.mxu0 0.0
    %407 = vmatpush1.msra.mxu0 0.0
    %408 = vmatprep.subr.mxu0 0.0
    %409 = vmatpush1.msra.mxu0 0.0
    %410 = vmatprep.subr.mxu0 0.0
    %411 = vmatpush1.msra.mxu0 0.0
    %412 = vmatprep.subr.mxu0 0.0
    %413 = vmatpush1.msra.mxu0 0.0
    %414 = vmatprep.subr.mxu0 0.0
    %415 = vmatpush1.msra.mxu0 0.0
    %416 = vmatprep.subr.mxu0 0.0
    %417 = vmatpush1.msra.mxu0 0.0
    %418 = vmatprep.subr.mxu0 0.0
    %419 = vmatpush1.msra.mxu0 0.0
    %420 = vmatprep.subr.mxu0 0.0
    %421 = vmatpush1.msra.mxu0 0.0
    %422 = vmatprep.subr.mxu0 0.0
    %423 = vmatpush1.msra.mxu0 0.0
    %424 = vmatprep.subr.mxu0 0.0
    %425 = vmatpush1.msra.mxu0 0.0
    %426 = vmatprep.subr.mxu0 0.0
    %427 = vmatpush1.msra.mxu0 0.0
    %428 = vmatprep.mubr.f32.mxu0 0.0
    %429 = vmatmul.mubr.f32.gmra.mrb[0].mxu0 %v340
    %v430 = vpop.f32.mrb[0].mxu0
    %v431 = vadd.f32 %v293, %v430
    %v432 = vpop.f32.mrb[0].mxu0
    %433 = vmatprep.mubr.f32.mxu0 0.0
    %434 = vmatmul.mubr.f32.gmra.mrb[0].mxu0 %v342
    %v435 = vpop.f32.mrb[0].mxu0
    %v436 = vadd.f32 %v297, %v435
    %v437 = vpop.f32.mrb[0].mxu0
    %438 = vmatprep.mubr.f32.mxu0 0.0
    %439 = vmatmul.mubr.f32.gmra.mrb[0].mxu0 %v344
    %v440 = vpop.f32.mrb[0].mxu0
    %v441 = vadd.f32 %v301, %v440
    %v442 = vpop.f32.mrb[0].mxu0
    %443 = vmatprep.mubr.f32.mxu0 0.0
    %444 = vmatmul.mubr.f32.gmra.mrb[0].mxu0 %v346
    %v445 = vpop.f32.mrb[0].mxu0
    %v446 = vadd.f32 %v305, %v445
    %v447 = vpop.f32.mrb[0].mxu0
    %448 = vmatprep.mubr.f32.mxu0 0.0
    %449 = vmatmul.mubr.f32.gmra.mrb[0].mxu0 %v348
    %v450 = vpop.f32.mrb[0].mxu0
    %v451 = vadd.f32 %v309, %v450
    %v452 = vpop.f32.mrb[0].mxu0
    %453 = vmatprep.mubr.f32.mxu0 0.0
    %454 = vmatmul.mubr.f32.gmra.mrb[0].mxu0 %v350
    %v455 = vpop.f32.mrb[0].mxu0
    %v456 = vadd.f32 %v313, %v455
    %v457 = vpop.f32.mrb[0].mxu0
    %458 = vmatprep.mubr.f32.mxu0 0.0
    %459 = vmatmul.mubr.f32.gmra.mrb[0].mxu0 %v352
    %v460 = vpop.f32.mrb[0].mxu0
    %v461 = vadd.f32 %v317, %v460
    %v462 = vpop.f32.mrb[0].mxu0
    %463 = vmatprep.mubr.f32.mxu0 0.0
    %464 = vmatmul.mubr.f32.gmra.mrb[0].mxu0 %v354
    %v465 = vpop.f32.mrb[0].mxu0
    %v466 = vadd.f32 %v321, %v465
    %v467 = vpop.f32.mrb[0].mxu0
    %468 = vmatprep.mubr.f32.mxu0 0.0
    %469 = vmatmul.mubr.f32.gmra.mrb[0].mxu0 %v356
    %v470 = vpop.f32.mrb[0].mxu0
    %v471 = vadd.f32 %v325, %v470
    %v472 = vpop.f32.mrb[0].mxu0
    %473 = vmatprep.mubr.f32.mxu0 0.0
    %474 = vmatmul.mubr.f32.gmra.mrb[0].mxu0 %v358
    %v475 = vpop.f32.mrb[0].mxu0
    %v476 = vadd.f32 %v329, %v475
    %v477 = vpop.f32.mrb[0].mxu0
    %478 = vmatprep.mubr.f32.mxu0 0.0
    %479 = vmatmul.mubr.f32.gmra.mrb[0].mxu0 %v360
    %v480 = vpop.f32.mrb[0].mxu0
    %v481 = vadd.f32 %v333, %v480
    %v482 = vpop.f32.mrb[0].mxu0
    %483 = vmatprep.mubr.f32.mxu0 0.0
    %484 = vmatmul.mubr.f32.gmra.mrb[0].mxu0 %v362
    %v485 = vpop.f32.mrb[0].mxu0
    %v486 = vadd.f32 %v337, %v485
    %v487 = vpop.f32.mrb[0].mxu0
    %488 = vdwg.mxu0
    %v489 = vmax.f32 %v431, 0.0
    %v490 = vmax.f32 %v436, 0.0
    %v491 = vmax.f32 %v441, 0.0
    %v492 = vmax.f32 %v446, 0.0
    %v493 = vmax.f32 %v451, 0.0
    %v494 = vmax.f32 %v456, 0.0
    %v495 = vmax.f32 %v461, 0.0
    %v496 = vmax.f32 %v466, 0.0
    %v497 = vtanh.pop %v471
    %v498 = vtanh.pop %v476
    %v499 = vtanh.pop %v481
    %v500 = vtanh.pop %v486
    %v501 = vld [vmem:[#allocation7] sm:$0xff]
    %503 = vrot.lane.b32.xlu0 %v501, 64
    %v504 = vpop.permute.xlu0 %503
    %vm505 = vcmask 261120
    %v506 = vsel %vm505, %v504, 0
    %508 = vmatprep.subr.mxu0 0.0
    %509 = vmatpush1.msra.mxu0 %v497
    %510 = vmatprep.subr.mxu0 0.0
    %511 = vmatpush1.msra.mxu0 %v498
    %512 = vmatprep.subr.mxu0 0.0
    %513 = vmatpush1.msra.mxu0 %v499
    %514 = vmatprep.subr.mxu0 0.0
    %515 = vmatpush1.msra.mxu0 %v500
    %516 = vmatprep.subr.mxu0 0.0
    %517 = vmatpush1.msra.mxu0 0.0
    %518 = vmatprep.subr.mxu0 0.0
    %519 = vmatpush1.msra.mxu0 0.0
    %520 = vmatprep.subr.mxu0 0.0
    %521 = vmatpush1.msra.mxu0 0.0
    %522 = vmatprep.subr.mxu0 0.0
    %523 = vmatpush1.msra.mxu0 0.0
    %524 = vmatprep.subr.mxu0 0.0
    %525 = vmatpush1.msra.mxu0 0.0
    %526 = vmatprep.subr.mxu0 0.0
    %527 = vmatpush1.msra.mxu0 0.0
    %528 = vmatprep.subr.mxu0 0.0
    %529 = vmatpush1.msra.mxu0 0.0
    %530 = vmatprep.subr.mxu0 0.0
    %531 = vmatpush1.msra.mxu0 0.0
    %532 = vmatprep.subr.mxu0 0.0
    %533 = vmatpush1.msra.mxu0 0.0
    %534 = vmatprep.subr.mxu0 0.0
    %535 = vmatpush1.msra.mxu0 0.0
    %536 = vmatprep.subr.mxu0 0.0
    %537 = vmatpush1.msra.mxu0 0.0
    %538 = vmatprep.subr.mxu0 0.0
    %539 = vmatpush1.msra.mxu0 0.0
    %540 = vmatprep.subr.mxu0 0.0
    %541 = vmatpush1.msra.mxu0 0.0
    %542 = vmatprep.subr.mxu0 0.0
    %543 = vmatpush1.msra.mxu0 0.0
    %544 = vmatprep.subr.mxu0 0.0
    %545 = vmatpush1.msra.mxu0 0.0
    %546 = vmatprep.subr.mxu0 0.0
    %547 = vmatpush1.msra.mxu0 0.0
    %548 = vmatprep.subr.mxu0 0.0
    %549 = vmatpush1.msra.mxu0 0.0
    %550 = vmatprep.subr.mxu0 0.0
    %551 = vmatpush1.msra.mxu0 0.0
    %552 = vmatprep.subr.mxu0 0.0
    %553 = vmatpush1.msra.mxu0 0.0
    %554 = vmatprep.subr.mxu0 0.0
    %555 = vmatpush1.msra.mxu0 0.0
    %556 = vmatprep.subr.mxu0 0.0
    %557 = vmatpush1.msra.mxu0 0.0
    %558 = vmatprep.subr.mxu0 0.0
    %559 = vmatpush1.msra.mxu0 0.0
    %560 = vmatprep.subr.mxu0 0.0
    %561 = vmatpush1.msra.mxu0 0.0
    %562 = vmatprep.subr.mxu0 0.0
    %563 = vmatpush1.msra.mxu0 0.0
    %564 = vmatprep.subr.mxu0 0.0
    %565 = vmatpush1.msra.mxu0 0.0
    %566 = vmatprep.subr.mxu0 0.0
    %567 = vmatpush1.msra.mxu0 0.0
    %568 = vmatprep.subr.mxu0 0.0
    %569 = vmatpush1.msra.mxu0 0.0
    %570 = vmatprep.subr.mxu0 0.0
    %571 = vmatpush1.msra.mxu0 0.0
    %572 = vmatprep.mubr.f32.mxu0 0.0
    %573 = vmatmul.mubr.f32.gmra.mrb[0].mxu0 %v506
    %v574 = vpop.f32.mrb[0].mxu0
    %v575 = vadd.f32 0.0, %v574
    %v576 = vpop.f32.mrb[0].mxu0
    %577 = vdwg.mxu0
    %vm578 = vcmask 523264
    %v579 = vsel %vm578, %v501, 0
    %581 = vmatprep.subr.mxu0 0.0
    %582 = vmatpush1.msra.mxu0 %v489
    %583 = vmatprep.subr.mxu0 0.0
    %584 = vmatpush1.msra.mxu0 %v490
    %585 = vmatprep.subr.mxu0 0.0
    %586 = vmatpush1.msra.mxu0 %v491
    %587 = vmatprep.subr.mxu0 0.0
    %588 = vmatpush1.msra.mxu0 %v492
    %589 = vmatprep.subr.mxu0 0.0
    %590 = vmatpush1.msra.mxu0 %v493
    %591 = vmatprep.subr.mxu0 0.0
    %592 = vmatpush1.msra.mxu0 %v494
    %593 = vmatprep.subr.mxu0 0.0
    %594 = vmatpush1.msra.mxu0 %v495
    %595 = vmatprep.subr.mxu0 0.0
    %596 = vmatpush1.msra.mxu0 %v496
    %597 = vmatprep.subr.mxu0 0.0
    %598 = vmatpush1.msra.mxu0 0.0
    %599 = vmatprep.subr.mxu0 0.0
    %600 = vmatpush1.msra.mxu0 0.0
    %601 = vmatprep.subr.mxu0 0.0
    %602 = vmatpush1.msra.mxu0 0.0
    %603 = vmatprep.subr.mxu0 0.0
    %604 = vmatpush1.msra.mxu0 0.0
    %605 = vmatprep.subr.mxu0 0.0
    %606 = vmatpush1.msra.mxu0 0.0
    %607 = vmatprep.subr.mxu0 0.0
    %608 = vmatpush1.msra.mxu0 0.0
    %609 = vmatprep.subr.mxu0 0.0
    %610 = vmatpush1.msra.mxu0 0.0
    %611 = vmatprep.subr.mxu0 0.0
    %612 = vmatpush1.msra.mxu0 0.0
    %613 = vmatprep.subr.mxu0 0.0
    %614 = vmatpush1.msra.mxu0 0.0
    %615 = vmatprep.subr.mxu0 0.0
    %616 = vmatpush1.msra.mxu0 0.0
    %617 = vmatprep.subr.mxu0 0.0
    %618 = vmatpush1.msra.mxu0 0.0
    %619 = vmatprep.subr.mxu0 0.0
    %620 = vmatpush1.msra.mxu0 0.0
    %621 = vmatprep.subr.mxu0 0.0
    %622 = vmatpush1.msra.mxu0 0.0
    %623 = vmatprep.subr.mxu0 0.0
    %624 = vmatpush1.msra.mxu0 0.0
    %625 = vmatprep.subr.mxu0 0.0
    %626 = vmatpush1.msra.mxu0 0.0
    %627 = vmatprep.subr.mxu0 0.0
    %628 = vmatpush1.msra.mxu0 0.0
    %629 = vmatprep.subr.mxu0 0.0
    %630 = vmatpush1.msra.mxu0 0.0
    %631 = vmatprep.subr.mxu0 0.0
    %632 = vmatpush1.msra.mxu0 0.0
    %633 = vmatprep.subr.mxu0 0.0
    %634 = vmatpush1.msra.mxu0 0.0
    %635 = vmatprep.subr.mxu0 0.0
    %636 = vmatpush1.msra.mxu0 0.0
    %637 = vmatprep.subr.mxu0 0.0
    %638 = vmatpush1.msra.mxu0 0.0
    %639 = vmatprep.subr.mxu0 0.0
    %640 = vmatpush1.msra.mxu0 0.0
    %641 = vmatprep.subr.mxu0 0.0
    %642 = vmatpush1.msra.mxu0 0.0
    %643 = vmatprep.subr.mxu0 0.0
    %644 = vmatpush1.msra.mxu0 0.0
    %645 = vmatprep.mubr.f32.mxu0 0.0
    %646 = vmatmul.mubr.f32.gmra.mrb[0].mxu0 %v579
    %v647 = vpop.f32.mrb[0].mxu0
    %v648 = vadd.f32 %v575, %v647
    %v649 = vpop.f32.mrb[0].mxu0
    %650 = vdwg.mxu0
    %652 = vset.pattern.permute.xlu0 100
    %653 = vperm.xlu0 %652, %v66
    %v654 = vpop.permute.xlu0 %653
    %v656 = vadd.f32 %v648, %v654
    %v657 = vsub.f32 %v52, -1.0
    %v658 = vmul.f32 %v657, %v657
    %v659 = vmul.f32 %v53, %v53
    %v660 = vadd.f32 %v658, %v659
    %v661 = vlog2.pop %v660
    %v662 = vmul.f32 %v661, 0.6931472
    %v663 = vmul.f32 %v662, 0.01
    %v664 = vsub.f32 %v52, 1.0
    %v665 = vmul.f32 %v664, %v664
    %v666 = vadd.f32 %v665, %v659
    %v667 = vlog2.pop %v666
    %v668 = vmul.f32 %v667, 0.6931472
    %v669 = vmul.f32 %v668, 0.01
    %v670 = vmul.f32 %v663, %v656
    %v672 = vrot.slane %v656, 1
    %v674 = vmul.f32 %v669, %v672
    %v675 = vadd.f32 %v670, %v674
    %v676 = vrot.slane %v656, 2
    %v678 = vadd.f32 %v675, %v676
    %679 = vst [vmem:[#allocation8] sm:$0x1] %v678
    // Predicated region
    $region26: #{tpu_custom_call.1} parent=1 // pred_check
      _
    $region27: #{tpu_custom_call.1} parent=1 // pred_check_branch
      %681 = sbr.rel (0) target = $region29
    $region28: #{tpu_custom_call.1} parent=1 // pred_region
      %s683 = ssub.s32 16, 16
      %684 = vsyncadd [#allocation4], %s683
      %s686 = sshll.u32 [#allocation8], 4
      %s687 = int_to_ptr.vmem [resolvable:$true] %s686
      %689 = dma.vmem_to_hbm [thread:$0]  %s687, 16, %s3, [#allocation4]
    $region29: #{tpu_custom_call.1} parent=1 // pred_fallthru
      _
    // Predicated region
    $region30: #{tpu_custom_call.1} parent=1 // pred_check
      _
    $region31: #{tpu_custom_call.1} parent=1 // pred_check_branch
      %691 = sbr.rel (0) target = $region33
    $region32: #{tpu_custom_call.1} parent=1 // pred_region
      %692 = dma.done [#allocation4], 16
    $region33: #{tpu_custom_call.1} parent=1 // pred_fallthru
      _
    %693 = vsyncpa [#allocation3], 1
    %694 = vsyncpa [#allocation6], 1
    %695 = vsyncpa [#allocation4], 1

</llo_original>
